<compile_context>
chip_gen: v7x
topology: tpu7x:2x2x1
jax: 0.10.0
libtpu: 0.0.40
codegen_flags: <defaults>
</compile_context>

<pallas_src>
import jax
import jax.numpy as jnp
from jax import lax
from jax.experimental import pallas as pl
from jax.experimental.pallas import tpu as pltpu


def _round_up(x, m):
    return ((x + m - 1) // m) * m


_TB_MAX = 2048                       # batch-tile ceiling (rows per grid step)
_VMEM_BUDGET = 40 * 1024 * 1024      # per-step footprint cap (fits v7x 64 MiB)


def _vmem_bytes(tb, d, h1, h2):
    """Rough per-step VMEM footprint (double-buffered x + resident weights + acts)."""
    x_bytes = 2 * tb * d * 4                               # f32 x tile, 2 buffers
    w_bytes = d * h1 * 2 + h1 * h2 * 2 + (h1 + 2 * h2 + 1) * 4
    act_bytes = tb * h1 * 4 + tb * h1 * 2 + tb * h2 * 4    # h1 f32+bf16, h2 f32
    out_bytes = 2 * tb * 4
    return x_bytes + w_bytes + act_bytes + out_bytes


def _choose_batch_tile(batch, d, h1, h2):
    """Pick the batch tile (rows per grid step) and the padded batch size."""
    b16 = _round_up(batch, 16)       # bf16 packs 16 sublanes per vreg
    if b16 <= 256:
        tb = b16                     # one tile; all block dims == array dims
    else:
        # >= 2 grid steps (v7x megacore), 128-row aligned, capped at _TB_MAX.
        tb = min(_TB_MAX, _round_up(pl.cdiv(b16, 2), 128))
        # Shrink if the per-step footprint would blow the VMEM budget
        # (only matters for very large obs_dim * num_agents).
        while tb > 128 and _vmem_bytes(tb, d, h1, h2) > _VMEM_BUDGET:
            tb = _round_up(tb // 2, 128)
    return tb, _round_up(batch, tb)


def _mlp_value_kernel(x_ref, w1_ref, b1_ref, w2_ref, b2_ref, w3_ref, b3_ref,
                      o_ref):
    """Fused 3-layer MLP over one batch tile of TB rows.

    Layers 1/2: bf16 MXU matmuls with f32 accumulation, f32 bias + ReLU (VPU).
    Layer 3 (H2 -> 1): dot_general contraction producing a lane-dense (1, TB) row.
    """
    # bf16 cast happens in VMEM right before the MXU (x arrives as f32).
    x = x_ref[...].astype(jnp.bfloat16)                                # (TB, D)
    h1 = jnp.dot(x, w1_ref[...], preferred_element_type=jnp.float32)  # (TB, H1)
    h1 = jnp.maximum(h1 + b1_ref[...], 0.0).astype(jnp.bfloat16)      # bf16 spill
    h2 = jnp.dot(h1, w2_ref[...], preferred_element_type=jnp.float32) # (TB, H2)
    h2 = jnp.maximum(h2 + b2_ref[...], 0.0)                           # f32
    # Head: out[0, j] = sum_k w3[0, k] * h2[j, k]  ->  lane-dense (1, TB) row.
    v = lax.dot_general(w3_ref[...], h2,
                        dimension_numbers=(((1,), (1,)), ((), ())),
                        preferred_element_type=jnp.float32)            # (1, TB)
    o_ref[0] = v + b3_ref[...]


def prepare_params(params):
    """One-time (per parameter update) preprocessing into kernel-ready layout.

    Hoisted out of the per-forward path: bf16 casts of the MXU weights,
    row-vector biases, (1, H2) head weights and (1, 1) head bias.
    """
    w1, b1, w2, b2, w3, b3 = params
    return (
        w1.astype(jnp.bfloat16),                  # (D,  H1) bf16
        b1.reshape(1, -1).astype(jnp.float32),    # (1,  H1) f32
        w2.astype(jnp.bfloat16),                  # (H1, H2) bf16
        b2.reshape(1, -1).astype(jnp.float32),    # (1,  H2) f32
        w3.reshape(1, -1).astype(jnp.float32),    # (1,  H2) f32
        b3.reshape(1, 1).astype(jnp.float32),     # (1,  1 ) f32
    )


@jax.jit
def centralized_value_forward(obs_all_agents, prepared_params):
    """obs_all_agents: (B, num_agents, obs_dim) f32 -> values (B,) f32."""
    w1, b1, w2, b2, w3, b3 = prepared_params
    batch = obs_all_agents.shape[0]
    x = obs_all_agents.reshape(batch, -1).astype(jnp.float32)   # .view(B, -1)

    d = x.shape[1]
    h1_dim = w1.shape[1]
    h2_dim = w2.shape[1]

    tb, b_pad = _choose_batch_tile(batch, d, h1_dim, h2_dim)
    if b_pad != batch:
        # Only hit when batch is not a multiple of the tile; padded rows are
        # computed on zeros (row-independent) and sliced off below.
        x = jnp.pad(x, ((0, b_pad - batch), (0, 0)))

    num_tiles = b_pad // tb

    flops = 2 * b_pad * (d * h1_dim + h1_dim * h2_dim + h2_dim)
    bytes_accessed = (b_pad * d * 4 + w1.size * 2 + w2.size * 2
                      + (b1.size + b2.size + w3.size + b3.size) * 4
                      + b_pad * 4)
    vmem_limit = int(min(48 * 1024 * 1024,
                         max(16 * 1024 * 1024,
                             2 * _vmem_bytes(tb, d, h1_dim, h2_dim))))

    out = pl.pallas_call(
        _mlp_value_kernel,
        out_shape=jax.ShapeDtypeStruct((num_tiles, 1, tb), jnp.float32),
        grid=(num_tiles,),
        in_specs=[
            # Streaming f32 x tile; last dim = full array dim, so no pad copy.
            # (If profiling shows exposed x DMA on v6e, add
            #  pipeline_mode=pl.Buffered(3) here.)
            pl.BlockSpec((tb, d), lambda i: (i, 0)),
            # VMEM-resident weights / biases (constant index maps).
            pl.BlockSpec((d, h1_dim), lambda i: (0, 0)),
            pl.BlockSpec((1, h1_dim), lambda i: (0, 0)),
            pl.BlockSpec((h1_dim, h2_dim), lambda i: (0, 0)),
            pl.BlockSpec((1, h2_dim), lambda i: (0, 0)),
            pl.BlockSpec((1, h2_dim), lambda i: (0, 0)),
            pl.BlockSpec((1, 1), lambda i: (0, 0)),
        ],
        # Lane-dense output: one full (1, tb) row per grid step.
        out_specs=pl.BlockSpec((1, 1, tb), lambda i: (i, 0, 0)),
        compiler_params=pltpu.CompilerParams(
            dimension_semantics=("parallel",),
            vmem_limit_bytes=vmem_limit),
        cost_estimate=pl.CostEstimate(
            flops=flops, transcendentals=0, bytes_accessed=bytes_accessed),
    )(x, w1, b1, w2, b2, w3, b3)

    return out.reshape(b_pad)[:batch]                            # .squeeze(-1)


def init_params(key, input_dim, hidden_sizes=(256, 128)):
    """nn.Linear-style U(-1/sqrt(fan_in), +1/sqrt(fan_in)) init.

    Weights are stored as (in, out) so the kernel computes x @ W (== x @ W_pt.T).
    """
    dims = [input_dim, *hidden_sizes, 1]
    params = []
    for i in range(len(dims) - 1):
        fan_in, fan_out = dims[i], dims[i + 1]
        key, kw, kb = jax.random.split(key, 3)
        bound = 1.0 / jnp.sqrt(fan_in)
        w = jax.random.uniform(kw, (fan_in, fan_out), jnp.float32, -bound, bound)
        b = jax.random.uniform(kb, (fan_out,), jnp.float32, -bound, bound)
        params.extend([w, b])
    return tuple(params)


def _reference_forward(obs_all_agents, params):
    """Pure-JAX f32 reference of the PyTorch forward."""
    w1, b1, w2, b2, w3, b3 = params
    x = obs_all_agents.reshape(obs_all_agents.shape[0], -1)
    h = jnp.maximum(x @ w1 + b1, 0.0)
    h = jnp.maximum(h @ w2 + b2, 0.0)
    return (h @ w3 + b3)[:, 0]


if __name__ == "__main__":
    # Small, module-consistent shapes: batch=2, num_agents=4, obs_dim=8
    # -> flattened input_dim = 32; hidden_sizes default (256, 128).
    batch, num_agents, obs_dim = 2, 4, 8
    hidden_sizes = (256, 128)

    key = jax.random.PRNGKey(0)
    key, k_obs = jax.random.split(key)
    obs_all_agents = jax.random.normal(
        k_obs, (batch, num_agents, obs_dim), dtype=jnp.float32)

    params = init_params(key, obs_dim * num_agents, hidden_sizes)
    dev_params = prepare_params(params)      # hoisted: once per param update

    values = centralized_value_forward(obs_all_agents, dev_params)
    values = jax.block_until_ready(values)
    assert values.shape == (batch,), values.shape
    assert values.dtype == jnp.float32

    # Numerical sanity check (loose tolerance: bf16 MXU inputs, f32 accumulate).
    ref = _reference_forward(obs_all_agents, params)
    assert jnp.allclose(values, ref, atol=5e-2, rtol=5e-2), (values, ref)

    print("KERNEL_OK")
</pallas_src>

<mosaic_0001>
module attributes {stable_mosaic.version = 11 : i64} {
  func.func @_mlp_value_kernel(%arg0: i32, %arg1: memref<16x32xf32, #tpu.memory_space<vmem>>, %arg2: memref<32x256xbf16, #tpu.memory_space<vmem>>, %arg3: memref<1x256xf32, #tpu.memory_space<vmem>>, %arg4: memref<256x128xbf16, #tpu.memory_space<vmem>>, %arg5: memref<1x128xf32, #tpu.memory_space<vmem>>, %arg6: memref<1x128xf32, #tpu.memory_space<vmem>>, %arg7: memref<1x1xf32, #tpu.memory_space<vmem>>, %arg8: memref<1x1x16xf32, #tpu.memory_space<vmem>>) attributes {dimension_semantics = [#tpu.dimension_semantics<parallel>], iteration_bounds = array<i64: 1>, scalar_prefetch = 0 : i64, scratch_operands = 0 : i64, tpu.core_type = #tpu.core_type<tc>, window_params = [{transform_indices = @transform_0, window_bounds = array<i64: 16, 32>}, {pipeline_mode = #tpu.pipeline_mode<synchronous>, transform_indices = @transform_1, window_bounds = array<i64: 32, 256>}, {pipeline_mode = #tpu.pipeline_mode<synchronous>, transform_indices = @transform_2, window_bounds = array<i64: 1, 256>}, {pipeline_mode = #tpu.pipeline_mode<synchronous>, transform_indices = @transform_3, window_bounds = array<i64: 256, 128>}, {pipeline_mode = #tpu.pipeline_mode<synchronous>, transform_indices = @transform_4, window_bounds = array<i64: 1, 128>}, {pipeline_mode = #tpu.pipeline_mode<synchronous>, transform_indices = @transform_5, window_bounds = array<i64: 1, 128>}, {pipeline_mode = #tpu.pipeline_mode<synchronous>, transform_indices = @transform_6, window_bounds = array<i64: 1, 1>}, {transform_indices = @transform_7, window_bounds = array<i64: 1, 1, 16>}]} {
    %c0 = arith.constant 0 : index
    %c0_0 = arith.constant 0 : index
    %0 = vector.load %arg1[%c0, %c0_0] : memref<16x32xf32, #tpu.memory_space<vmem>>, vector<16x32xf32>
    %1 = arith.truncf %0 : vector<16x32xf32> to vector<16x32xbf16>
    %c0_1 = arith.constant 0 : index
    %c0_2 = arith.constant 0 : index
    %2 = vector.load %arg2[%c0_1, %c0_2] : memref<32x256xbf16, #tpu.memory_space<vmem>>, vector<32x256xbf16>
    %cst = arith.constant dense<0.000000e+00> : vector<16x256xf32>
    %3 = tpu.matmul %1, %2, %cst {dimension_numbers = #tpu.dot_dimension_numbers<[1], [0], [0], [1], [0, 0, 1, 1], [], []>} : vector<16x32xbf16>, vector<32x256xbf16>, vector<16x256xf32> -> vector<16x256xf32>
    %c0_3 = arith.constant 0 : index
    %c0_4 = arith.constant 0 : index
    %4 = vector.load %arg3[%c0_3, %c0_4] : memref<1x256xf32, #tpu.memory_space<vmem>>, vector<1x256xf32>
    %5 = vector.broadcast %4 : vector<1x256xf32> to vector<16x256xf32>
    %6 = arith.addf %3, %5 : vector<16x256xf32>
    %cst_5 = arith.constant 0.000000e+00 : f32
    %7 = vector.broadcast %cst_5 : f32 to vector<16x256xf32>
    %8 = arith.maximumf %6, %7 : vector<16x256xf32>
    %9 = arith.truncf %8 : vector<16x256xf32> to vector<16x256xbf16>
    %c0_6 = arith.constant 0 : index
    %c0_7 = arith.constant 0 : index
    %10 = vector.load %arg4[%c0_6, %c0_7] : memref<256x128xbf16, #tpu.memory_space<vmem>>, vector<256x128xbf16>
    %cst_8 = arith.constant dense<0.000000e+00> : vector<16x128xf32>
    %11 = tpu.matmul %9, %10, %cst_8 {dimension_numbers = #tpu.dot_dimension_numbers<[1], [0], [0], [1], [0, 0, 1, 1], [], []>} : vector<16x256xbf16>, vector<256x128xbf16>, vector<16x128xf32> -> vector<16x128xf32>
    %c0_9 = arith.constant 0 : index
    %c0_10 = arith.constant 0 : index
    %12 = vector.load %arg5[%c0_9, %c0_10] : memref<1x128xf32, #tpu.memory_space<vmem>>, vector<1x128xf32>
    %13 = vector.broadcast %12 : vector<1x128xf32> to vector<16x128xf32>
    %14 = arith.addf %11, %13 : vector<16x128xf32>
    %cst_11 = arith.constant 0.000000e+00 : f32
    %15 = vector.broadcast %cst_11 : f32 to vector<16x128xf32>
    %16 = arith.maximumf %14, %15 : vector<16x128xf32>
    %c0_12 = arith.constant 0 : index
    %c0_13 = arith.constant 0 : index
    %17 = vector.load %arg6[%c0_12, %c0_13] : memref<1x128xf32, #tpu.memory_space<vmem>>, vector<1x128xf32>
    %cst_14 = arith.constant dense<0.000000e+00> : vector<1x16xf32>
    %18 = tpu.matmul %17, %16, %cst_14 {dimension_numbers = #tpu.dot_dimension_numbers<[1], [1], [0], [0], [0, 0, 1, 0], [], []>} : vector<1x128xf32>, vector<16x128xf32>, vector<1x16xf32> -> vector<1x16xf32>
    %c0_15 = arith.constant 0 : index
    %c0_16 = arith.constant 0 : index
    %19 = vector.load %arg7[%c0_15, %c0_16] : memref<1x1xf32, #tpu.memory_space<vmem>>, vector<1x1xf32>
    %20 = vector.broadcast %19 : vector<1x1xf32> to vector<1x16xf32>
    %21 = arith.addf %18, %20 : vector<1x16xf32>
    %c0_17 = arith.constant 0 : index
    %c0_18 = arith.constant 0 : index
    %c0_19 = arith.constant 0 : index
    %22 = vector.load %arg8[%c0_17, %c0_18, %c0_19] : memref<1x1x16xf32, #tpu.memory_space<vmem>>, vector<1x1x16xf32>
    %23 = vector.shape_cast %22 : vector<1x1x16xf32> to vector<1x16xf32>
    %24 = vector.shape_cast %21 : vector<1x16xf32> to vector<1x1x16xf32>
    tpu.vector_store %arg8[%c0_17, %c0_18, %c0_19], %24 {strides = array<i32>} : memref<1x1x16xf32, #tpu.memory_space<vmem>>, vector<1x1x16xf32>,
    return
  }
  func.func @transform_0(%arg0: i32) -> (i32, i32) {
    %c0_i32 = arith.constant 0 : i32
    %c0_i32_0 = arith.constant 0 : i32
    return %arg0, %c0_i32 : i32, i32
  }
  func.func @transform_1(%arg0: i32) -> (i32, i32) {
    %c0_i32 = arith.constant 0 : i32
    %c0_i32_0 = arith.constant 0 : i32
    %c0_i32_1 = arith.constant 0 : i32
    return %c0_i32, %c0_i32_0 : i32, i32
  }
  func.func @transform_2(%arg0: i32) -> (i32, i32) {
    %c0_i32 = arith.constant 0 : i32
    %c0_i32_0 = arith.constant 0 : i32
    %c0_i32_1 = arith.constant 0 : i32
    return %c0_i32, %c0_i32_0 : i32, i32
  }
  func.func @transform_3(%arg0: i32) -> (i32, i32) {
    %c0_i32 = arith.constant 0 : i32
    %c0_i32_0 = arith.constant 0 : i32
    %c0_i32_1 = arith.constant 0 : i32
    return %c0_i32, %c0_i32_0 : i32, i32
  }
  func.func @transform_4(%arg0: i32) -> (i32, i32) {
    %c0_i32 = arith.constant 0 : i32
    %c0_i32_0 = arith.constant 0 : i32
    %c0_i32_1 = arith.constant 0 : i32
    return %c0_i32, %c0_i32_0 : i32, i32
  }
  func.func @transform_5(%arg0: i32) -> (i32, i32) {
    %c0_i32 = arith.constant 0 : i32
    %c0_i32_0 = arith.constant 0 : i32
    %c0_i32_1 = arith.constant 0 : i32
    return %c0_i32, %c0_i32_0 : i32, i32
  }
  func.func @transform_6(%arg0: i32) -> (i32, i32) {
    %c0_i32 = arith.constant 0 : i32
    %c0_i32_0 = arith.constant 0 : i32
    %c0_i32_1 = arith.constant 0 : i32
    return %c0_i32, %c0_i32_0 : i32, i32
  }
  func.func @transform_7(%arg0: i32) -> (i32, i32, i32) {
    %c0_i32 = arith.constant 0 : i32
    %c0_i32_0 = arith.constant 0 : i32
    %c0_i32_1 = arith.constant 0 : i32
    return %arg0, %c0_i32, %c0_i32_0 : i32, i32, i32
  }
}

</mosaic_0001>

<llo_original>
// kernel: centralized_value_forward.1
$region0: #{centralized_value_forward.1}
  #allocation0 [shape = 'u32[]', space=smem, size = 0x4, offset = 0x4, fixed_abs, tag = 'smem constant byte address 0x4 - core index']
  #allocation1 [shape = 'u32[144,128]{1,0:T(1,128)}', space=vmem, size = 0x12000, scoped, tag = 'internal scratch']
  #allocation2 [shape = 'f32[1,1]{1,0:T(1,128)S(1)}', space=vmem, size = 0x200, scoped, tag = 'scoped memory for centralized_value_forward.1']
  %s0 = inlined_call_operand.vmem [shape: f32[16,32], index: 0, kind: input, shape index: {}]
  %s1 = inlined_call_operand.vmem [shape: bf16[32,256], index: 1, kind: input, shape index: {}]
  %s2 = inlined_call_operand.vmem [shape: f32[1,256], index: 2, kind: input, shape index: {}]
  %s3 = inlined_call_operand.hbm [shape: bf16[256,128], index: 3, kind: input, shape index: {}]
  %s4 = inlined_call_operand.vmem [shape: f32[1,128], index: 4, kind: input, shape index: {}]
  %s5 = inlined_call_operand.vmem [shape: f32[1,128], index: 5, kind: input, shape index: {}]
  %s6 = inlined_call_operand.<no memory space> [shape: f32[1,1], index: 6, kind: input, shape index: {}]
  %s7 = inlined_call_operand.vmem [shape: f32[1,1,16], index: 7, kind: output, shape index: {}]
  %s8 = sld [smem:[#allocation0]]
  $region42: #{centralized_value_forward.1} parent=0
    _
  %s10 = ssub.s32 1, %s8
  %s11 = scalar_select 0, %s10, %s8
  %v12 = vstv %s6
  %13 = vst [vmem:[#allocation2] sm:$0x1] %v12
  $region1: #{centralized_value_forward.1} parent=0
    #allocation3 [shape = 'u8[65536]{0}', space=vmem, size = 0x10000, scoped, tag = 'input window, operand 3, single buffered']
    #allocation4 [shape = 's32[1]{0}', space=sflag, size = 0x4, scoped, tag = 'scoped memory for centralized_value_forward.1']
    %14 = vsyncpa [#allocation4], 0
    // Predicated region
    $region2: #{centralized_value_forward.1} parent=1 // pred_check
      _
    $region3: #{centralized_value_forward.1} parent=1 // pred_check_branch
      %16 = sbr.rel (0) target = $region5
    $region4: #{centralized_value_forward.1} parent=1 // pred_region
      _
    $region5: #{centralized_value_forward.1} parent=1 // pred_fallthru
      _
    // Predicated region
    $region6: #{centralized_value_forward.1} parent=1 // pred_check
      _
    $region7: #{centralized_value_forward.1} parent=1 // pred_check_branch
      %18 = sbr.rel (0) target = $region9
    $region8: #{centralized_value_forward.1} parent=1 // pred_region
      _
    $region9: #{centralized_value_forward.1} parent=1 // pred_fallthru
      _
    // Predicated region
    $region10: #{centralized_value_forward.1} parent=1 // pred_check
      _
    $region11: #{centralized_value_forward.1} parent=1 // pred_check_branch
      %20 = sbr.rel (0) target = $region13
    $region12: #{centralized_value_forward.1} parent=1 // pred_region
      _
    $region13: #{centralized_value_forward.1} parent=1 // pred_fallthru
      _
    // Predicated region
    $region14: #{centralized_value_forward.1} parent=1 // pred_check
      _
    $region15: #{centralized_value_forward.1} parent=1 // pred_check_branch
      %22 = sbr.rel (0) target = $region17
    $region16: #{centralized_value_forward.1} parent=1 // pred_region
      %s24 = ssub.s32 2048, 2048
      %25 = vsyncadd [#allocation4], %s24
      %s26 = sshll.u32 [#allocation3], 4
      %s27 = int_to_ptr.vmem [resolvable:$true] %s26
      %32 = dma.hbm_to_vmem [thread:$0]  %s3, 2048, %s27, [#allocation4], 64, 64, 4
    $region17: #{centralized_value_forward.1} parent=1 // pred_fallthru
      _
    // Predicated region
    $region18: #{centralized_value_forward.1} parent=1 // pred_check
      _
    $region19: #{centralized_value_forward.1} parent=1 // pred_check_branch
      %34 = sbr.rel (0) target = $region21
    $region20: #{centralized_value_forward.1} parent=1 // pred_region
      _
    $region21: #{centralized_value_forward.1} parent=1 // pred_fallthru
      _
    // Predicated region
    $region22: #{centralized_value_forward.1} parent=1 // pred_check
      _
    $region23: #{centralized_value_forward.1} parent=1 // pred_check_branch
      %36 = sbr.rel (0) target = $region25
    $region24: #{centralized_value_forward.1} parent=1 // pred_region
      _
    $region25: #{centralized_value_forward.1} parent=1 // pred_fallthru
      _
    // Predicated region
    $region26: #{centralized_value_forward.1} parent=1 // pred_check
      _
    $region27: #{centralized_value_forward.1} parent=1 // pred_check_branch
      %38 = sbr.rel (0) target = $region29
    $region28: #{centralized_value_forward.1} parent=1 // pred_region
      _
    $region29: #{centralized_value_forward.1} parent=1 // pred_fallthru
      _
    // Predicated region
    $region30: #{centralized_value_forward.1} parent=1 // pred_check
      _
    $region31: #{centralized_value_forward.1} parent=1 // pred_check_branch
      %40 = sbr.rel (0) target = $region33
    $region32: #{centralized_value_forward.1} parent=1 // pred_region
      %41 = dma.done [#allocation4], 2048
    $region33: #{centralized_value_forward.1} parent=1 // pred_fallthru
      _
    %v43 = vld [vmem:[%s0] sm:$0xff]
    %v44 = vld [vmem:[%s0 + $0x8] sm:$0xff]
    %v45 = vpack.c.bf16 %v44, %v43
    %v46 = vld [vmem:[%s1] sm:$0xff]
    %v47 = vld [vmem:[%s1 + $0x8] sm:$0xff]
    %v48 = vld [vmem:[%s1 + $0x10] sm:$0xff]
    %v49 = vld [vmem:[%s1 + $0x18] sm:$0xff]
    %v50 = vld [vmem:[%s2] sm:$0x3]
    %v52 = vlaneseq
    %v53 = vshrl.u32 %v52, 7
    %v54 = vsub.s32 0, %v53
    %v55 = vrot.slane %v50, %v54
    %v56 = vlaneseq
    %v57 = vshrl.u32 %v56, 7
    %v58 = vsub.s32 1, %v57
    %v59 = vrot.slane %v50, %v58
    %v66 = vunpack.c.l.b16 %v46
    %v67 = vunpack.c.h.b16 %v46
    %v68 = vunpack.c.l.b16 %v47
    %v69 = vunpack.c.h.b16 %v47
    %v70 = vunpack.c.l.b16 %v48
    %v71 = vunpack.c.h.b16 %v48
    %v72 = vunpack.c.l.b16 %v49
    %v73 = vunpack.c.h.b16 %v49
    %v74 = vpack.c.b16 %v68, %v66
    %v75 = vpack.c.b16 %v69, %v67
    %v76 = vpack.c.b16 %v72, %v70
    %v77 = vpack.c.b16 %v73, %v71
    %vm82 = vcmask 261120
    %v84 = vsel %vm82, %v45, 0
    %86 = vmatprep.subr.bf16.mxu0 %v75
    %87 = vmatpush1.bf16.msra.mxu0 %v74
    %88 = vmatprep.subr.bf16.mxu0 %v77
    %89 = vmatpush1.bf16.msra.mxu0 %v76
    %90 = vmatprep.subr.bf16.mxu0 0
    %91 = vmatpush1.bf16.msra.mxu0 0
    %92 = vmatprep.subr.bf16.mxu0 0
    %93 = vmatpush1.bf16.msra.mxu0 0
    %94 = vmatprep.subr.bf16.mxu0 0
    %95 = vmatpush1.bf16.msra.mxu0 0
    %96 = vmatprep.subr.bf16.mxu0 0
    %97 = vmatpush1.bf16.msra.mxu0 0
    %98 = vmatprep.subr.bf16.mxu0 0
    %99 = vmatpush1.bf16.msra.mxu0 0
    %100 = vmatprep.subr.bf16.mxu0 0
    %101 = vmatpush1.bf16.msra.mxu0 0
    %102 = vmatprep.subr.bf16.mxu0 0
    %103 = vmatpush1.bf16.msra.mxu0 0
    %104 = vmatprep.subr.bf16.mxu0 0
    %105 = vmatpush1.bf16.msra.mxu0 0
    %106 = vmatprep.subr.bf16.mxu0 0
    %107 = vmatpush1.bf16.msra.mxu0 0
    %108 = vmatprep.subr.bf16.mxu0 0
    %109 = vmatpush1.bf16.msra.mxu0 0
    %110 = vmatprep.subr.bf16.mxu0 0
    %111 = vmatpush1.bf16.msra.mxu0 0
    %112 = vmatprep.subr.bf16.mxu0 0
    %113 = vmatpush1.bf16.msra.mxu0 0
    %114 = vmatprep.subr.bf16.mxu0 0
    %115 = vmatpush1.bf16.msra.mxu0 0
    %116 = vmatprep.subr.bf16.mxu0 0
    %117 = vmatpush1.bf16.msra.mxu0 0
    %118 = vmatprep.mubr.bf16.mxu0 0
    %119 = vmatmul.mubr.bf16.gmra.mrb[0].mxu0 %v84
    %v120 = vpop.f32.mrb[0].mxu0
    %v121 = vadd.f32 %v55, %v120
    %v122 = vpop.f32.mrb[0].mxu0
    %v123 = vadd.f32 %v59, %v122
    %v124 = vpop.f32.mrb[0].mxu0
    %v125 = vadd.f32 %v55, %v124
    %v126 = vpop.f32.mrb[0].mxu0
    %v127 = vadd.f32 %v59, %v126
    %128 = vdwg.mxu0
    %v129 = vmax.f32 %v121, 0.0
    %v130 = vmax.f32 %v123, 0.0
    %v131 = vmax.f32 %v125, 0.0
    %v132 = vmax.f32 %v127, 0.0
    %v133 = vpack.c.bf16 %v131, %v129
    %v134 = vpack.c.bf16 %v132, %v130
    %v135 = vld [vmem:[#allocation3] sm:$0xf]
    %v136 = vld [vmem:[#allocation3 + $0x4] sm:$0xf]
    %v137 = vld [vmem:[#allocation3 + $0x8] sm:$0xf]
    %v138 = vld [vmem:[#allocation3 + $0xc] sm:$0xf]
    %v139 = vld [vmem:[#allocation3 + $0x10] sm:$0xf]
    %v140 = vld [vmem:[#allocation3 + $0x14] sm:$0xf]
    %v141 = vld [vmem:[#allocation3 + $0x18] sm:$0xf]
    %v142 = vld [vmem:[#allocation3 + $0x1c] sm:$0xf]
    %v143 = vld [vmem:[#allocation3 + $0x20] sm:$0xf]
    %v144 = vld [vmem:[#allocation3 + $0x24] sm:$0xf]
    %v145 = vld [vmem:[#allocation3 + $0x28] sm:$0xf]
    %v146 = vld [vmem:[#allocation3 + $0x2c] sm:$0xf]
    %v147 = vld [vmem:[#allocation3 + $0x30] sm:$0xf]
    %v148 = vld [vmem:[#allocation3 + $0x34] sm:$0xf]
    %v149 = vld [vmem:[#allocation3 + $0x38] sm:$0xf]
    %v150 = vld [vmem:[#allocation3 + $0x3c] sm:$0xf]
    %v151 = vld [vmem:[#allocation3 + $0x40] sm:$0xf]
    %v152 = vld [vmem:[#allocation3 + $0x44] sm:$0xf]
    %v153 = vld [vmem:[#allocation3 + $0x48] sm:$0xf]
    %v154 = vld [vmem:[#allocation3 + $0x4c] sm:$0xf]
    %v155 = vld [vmem:[#allocation3 + $0x50] sm:$0xf]
    %v156 = vld [vmem:[#allocation3 + $0x54] sm:$0xf]
    %v157 = vld [vmem:[#allocation3 + $0x58] sm:$0xf]
    %v158 = vld [vmem:[#allocation3 + $0x5c] sm:$0xf]
    %v159 = vld [vmem:[#allocation3 + $0x60] sm:$0xf]
    %v160 = vld [vmem:[#allocation3 + $0x64] sm:$0xf]
    %v161 = vld [vmem:[#allocation3 + $0x68] sm:$0xf]
    %v162 = vld [vmem:[#allocation3 + $0x6c] sm:$0xf]
    %v163 = vld [vmem:[#allocation3 + $0x70] sm:$0xf]
    %v164 = vld [vmem:[#allocation3 + $0x74] sm:$0xf]
    %v165 = vld [vmem:[#allocation3 + $0x78] sm:$0xf]
    %v166 = vld [vmem:[#allocation3 + $0x7c] sm:$0xf]
    %v167 = vld [vmem:[%s4] sm:$0x1]
    %v169 = vlaneseq
    %v170 = vshrl.u32 %v169, 7
    %v171 = vsub.s32 0, %v170
    %v172 = vrot.slane %v167, %v171
    %v206 = vunpack.c.l.b16 %v135
    %v207 = vunpack.c.l.b16 %v136
    %v208 = vunpack.c.l.b16 %v137
    %v209 = vunpack.c.l.b16 %v138
    %v210 = vunpack.c.l.b16 %v139
    %v211 = vunpack.c.l.b16 %v140
    %v212 = vunpack.c.l.b16 %v141
    %v213 = vunpack.c.l.b16 %v142
    %v214 = vunpack.c.l.b16 %v143
    %v215 = vunpack.c.l.b16 %v144
    %v216 = vunpack.c.l.b16 %v145
    %v217 = vunpack.c.l.b16 %v146
    %v218 = vunpack.c.l.b16 %v147
    %v219 = vunpack.c.l.b16 %v148
    %v220 = vunpack.c.l.b16 %v149
    %v221 = vunpack.c.l.b16 %v150
    %v222 = vunpack.c.l.b16 %v151
    %v223 = vunpack.c.l.b16 %v152
    %v224 = vunpack.c.l.b16 %v153
    %v225 = vunpack.c.l.b16 %v154
    %v226 = vunpack.c.l.b16 %v155
    %v227 = vunpack.c.l.b16 %v156
    %v228 = vunpack.c.l.b16 %v157
    %v229 = vunpack.c.l.b16 %v158
    %v230 = vunpack.c.l.b16 %v159
    %v231 = vunpack.c.l.b16 %v160
    %v232 = vunpack.c.l.b16 %v161
    %v233 = vunpack.c.l.b16 %v162
    %v234 = vunpack.c.l.b16 %v163
    %v235 = vunpack.c.l.b16 %v164
    %v236 = vunpack.c.l.b16 %v165
    %v237 = vunpack.c.l.b16 %v166
    %v238 = vpack.c.b16 %v207, %v206
    %v239 = vpack.c.b16 %v209, %v208
    %v240 = vpack.c.b16 %v211, %v210
    %v241 = vpack.c.b16 %v213, %v212
    %v242 = vpack.c.b16 %v215, %v214
    %v243 = vpack.c.b16 %v217, %v216
    %v244 = vpack.c.b16 %v219, %v218
    %v245 = vpack.c.b16 %v221, %v220
    %v246 = vpack.c.b16 %v223, %v222
    %v247 = vpack.c.b16 %v225, %v224
    %v248 = vpack.c.b16 %v227, %v226
    %v249 = vpack.c.b16 %v229, %v228
    %v250 = vpack.c.b16 %v231, %v230
    %v251 = vpack.c.b16 %v233, %v232
    %v252 = vpack.c.b16 %v235, %v234
    %v253 = vpack.c.b16 %v237, %v236
    %270 = vmatprep.subr.bf16.mxu0 0
    %271 = vmatpush1.bf16.msra.mxu0 %v238
    %272 = vmatprep.subr.bf16.mxu0 0
    %273 = vmatpush1.bf16.msra.mxu0 %v239
    %274 = vmatprep.subr.bf16.mxu0 0
    %275 = vmatpush1.bf16.msra.mxu0 %v240
    %276 = vmatprep.subr.bf16.mxu0 0
    %277 = vmatpush1.bf16.msra.mxu0 %v241
    %278 = vmatprep.subr.bf16.mxu0 0
    %279 = vmatpush1.bf16.msra.mxu0 %v242
    %280 = vmatprep.subr.bf16.mxu0 0
    %281 = vmatpush1.bf16.msra.mxu0 %v243
    %282 = vmatprep.subr.bf16.mxu0 0
    %283 = vmatpush1.bf16.msra.mxu0 %v244
    %284 = vmatprep.subr.bf16.mxu0 0
    %285 = vmatpush1.bf16.msra.mxu0 %v245
    %286 = vmatprep.subr.bf16.mxu0 0
    %287 = vmatpush1.bf16.msra.mxu0 %v246
    %288 = vmatprep.subr.bf16.mxu0 0
    %289 = vmatpush1.bf16.msra.mxu0 %v247
    %290 = vmatprep.subr.bf16.mxu0 0
    %291 = vmatpush1.bf16.msra.mxu0 %v248
    %292 = vmatprep.subr.bf16.mxu0 0
    %293 = vmatpush1.bf16.msra.mxu0 %v249
    %294 = vmatprep.subr.bf16.mxu0 0
    %295 = vmatpush1.bf16.msra.mxu0 %v250
    %296 = vmatprep.subr.bf16.mxu0 0
    %297 = vmatpush1.bf16.msra.mxu0 %v251
    %298 = vmatprep.subr.bf16.mxu0 0
    %299 = vmatpush1.bf16.msra.mxu0 %v252
    %300 = vmatprep.subr.bf16.mxu0 0
    %301 = vmatpush1.bf16.msra.mxu0 %v253
    %302 = vmatprep.mubr.bf16.mxu0 %v134
    %303 = vmatmul.mubr.bf16.gmra.mrb[0].mxu0 %v133
    %v304 = vpop.f32.mrb[0].mxu0
    %v305 = vadd.f32 %v172, %v304
    %v306 = vpop.f32.mrb[0].mxu0
    %v307 = vpop.f32.mrb[0].mxu0
    %v308 = vadd.f32 %v172, %v307
    %v309 = vpop.f32.mrb[0].mxu0
    %310 = vdwg.mxu0
    %v311 = vmax.f32 %v305, 0.0
    %v312 = vmax.f32 %v308, 0.0
    %v313 = vld [vmem:[%s5] sm:$0x1]
    %v314 = vld [vmem:[#allocation2] sm:$0x1]
    %316 = vset.pattern.permute.xlu0 0
    %317 = vperm.xlu0 %316, %v314
    %v318 = vpop.permute.xlu0 %317
    %v320 = vlaneseq
    %v321 = vshrl.u32 %v320, 7
    %v322 = vsub.s32 0, %v321
    %v323 = vrot.slane %v318, %v322
    %324 = vmatprep.subr.mxu0 0.0
    %325 = vmatpush1.xpose.msra.mxu0 %v311
    %326 = vmatprep.subr.mxu0 0.0
    %327 = vmatpush1.xpose.msra.mxu0 %v312
    %328 = vmatprep.subr.mxu0 0.0
    %329 = vmatpush1.xpose.msra.mxu0 0.0
    %330 = vmatprep.subr.mxu0 0.0
    %331 = vmatpush1.xpose.msra.mxu0 0.0
    %332 = vmatprep.subr.mxu0 0.0
    %333 = vmatpush1.xpose.msra.mxu0 0.0
    %334 = vmatprep.subr.mxu0 0.0
    %335 = vmatpush1.xpose.msra.mxu0 0.0
    %336 = vmatprep.subr.mxu0 0.0
    %337 = vmatpush1.xpose.msra.mxu0 0.0
    %338 = vmatprep.subr.mxu0 0.0
    %339 = vmatpush1.xpose.msra.mxu0 0.0
    %340 = vmatprep.subr.mxu0 0.0
    %341 = vmatpush1.xpose.msra.mxu0 0.0
    %342 = vmatprep.subr.mxu0 0.0
    %343 = vmatpush1.xpose.msra.mxu0 0.0
    %344 = vmatprep.subr.mxu0 0.0
    %345 = vmatpush1.xpose.msra.mxu0 0.0
    %346 = vmatprep.subr.mxu0 0.0
    %347 = vmatpush1.xpose.msra.mxu0 0.0
    %348 = vmatprep.subr.mxu0 0.0
    %349 = vmatpush1.xpose.msra.mxu0 0.0
    %350 = vmatprep.subr.mxu0 0.0
    %351 = vmatpush1.xpose.msra.mxu0 0.0
    %352 = vmatprep.subr.mxu0 0.0
    %353 = vmatpush1.xpose.msra.mxu0 0.0
    %354 = vmatprep.subr.mxu0 0.0
    %355 = vmatpush1.xpose.msra.mxu0 0.0
    %356 = vmatprep.subr.mxu0 0.0
    %357 = vmatpush1.xpose.msra.mxu0 0.0
    %358 = vmatprep.subr.mxu0 0.0
    %359 = vmatpush1.xpose.msra.mxu0 0.0
    %360 = vmatprep.subr.mxu0 0.0
    %361 = vmatpush1.xpose.msra.mxu0 0.0
    %362 = vmatprep.subr.mxu0 0.0
    %363 = vmatpush1.xpose.msra.mxu0 0.0
    %364 = vmatprep.subr.mxu0 0.0
    %365 = vmatpush1.xpose.msra.mxu0 0.0
    %366 = vmatprep.subr.mxu0 0.0
    %367 = vmatpush1.xpose.msra.mxu0 0.0
    %368 = vmatprep.subr.mxu0 0.0
    %369 = vmatpush1.xpose.msra.mxu0 0.0
    %370 = vmatprep.subr.mxu0 0.0
    %371 = vmatpush1.xpose.msra.mxu0 0.0
    %372 = vmatprep.subr.mxu0 0.0
    %373 = vmatpush1.xpose.msra.mxu0 0.0
    %374 = vmatprep.subr.mxu0 0.0
    %375 = vmatpush1.xpose.msra.mxu0 0.0
    %376 = vmatprep.subr.mxu0 0.0
    %377 = vmatpush1.xpose.msra.mxu0 0.0
    %378 = vmatprep.subr.mxu0 0.0
    %379 = vmatpush1.xpose.msra.mxu0 0.0
    %380 = vmatprep.subr.mxu0 0.0
    %381 = vmatpush1.xpose.msra.mxu0 0.0
    %382 = vmatprep.subr.mxu0 0.0
    %383 = vmatpush1.xpose.msra.mxu0 0.0
    %384 = vmatprep.subr.mxu0 0.0
    %385 = vmatpush1.xpose.msra.mxu0 0.0
    %386 = vmatprep.subr.mxu0 0.0
    %387 = vmatpush1.xpose.msra.mxu0 0.0
    %388 = vmatprep.mubr.f32.mxu0 0.0
    %389 = vmatmul.mubr.f32.gmra.mrb[0].mxu0 %v313
    %v390 = vpop.f32.mrb[0].mxu0
    %v391 = vadd.f32 %v323, %v390
    %v392 = vpop.f32.mrb[0].mxu0
    %393 = vdwg.mxu0
    %vm394 = vcmask 122880
    %395 = vst.msk [vmem:[%s7] sm:$0x1] %vm394, %v391
    // Predicated region
    $region34: #{centralized_value_forward.1} parent=1 // pred_check
      _
    $region35: #{centralized_value_forward.1} parent=1 // pred_check_branch
      %397 = sbr.rel (0) target = $region37
    $region36: #{centralized_value_forward.1} parent=1 // pred_region
      _
    $region37: #{centralized_value_forward.1} parent=1 // pred_fallthru
      _
    // Predicated region
    $region38: #{centralized_value_forward.1} parent=1 // pred_check
      _
    $region39: #{centralized_value_forward.1} parent=1 // pred_check_branch
      %399 = sbr.rel (0) target = $region41
    $region40: #{centralized_value_forward.1} parent=1 // pred_region
      _
    $region41: #{centralized_value_forward.1} parent=1 // pred_fallthru
      _
    %400 = vsyncpa [#allocation4], 1

</llo_original>
